<compile_context>
chip_gen: v6e
topology: v6e:2x2x1
jax: 0.10.0
libtpu: 0.0.40
codegen_flags: <defaults>
</compile_context>

<pallas_src>
import math

import jax
import jax.numpy as jnp
from jax.experimental import pallas as pl
from jax.experimental.pallas import tpu as pltpu


def _cdiv(a, b):
    return -(-a // b)


def _round_up(n, m):
    return ((n + m - 1) // m) * m


def _density_mlp_kernel(x_ref, w1_ref, b1_ref, w2_ref, b2_ref, w3_ref, b3_ref,
                        o_ref):
    """One batch tile of Linear->ReLU->Linear->ReLU->Linear->Sigmoid.

    x_ref holds the tile in its native (TB, D) layout; the trans-B contraction
    of layer 1 puts the batch on the 128-lane axis, so h1/h2 and the (1, TB)
    output store are all lane-dense.
    """
    x = x_ref[...].astype(w1_ref.dtype)            # in-kernel cast (no-op for f32)

    # Layer 1: W1 (H, D) . x^T (D, TB) -> (H, TB).  Contraction on the last
    # dims of both operands ("trans-B"); f32 accumulation on the MXU.
    h1 = jax.lax.dot_general(w1_ref[...], x,
                             dimension_numbers=(((1,), (1,)), ((), ())),
                             preferred_element_type=jnp.float32)
    h1 = jnp.maximum(h1 + b1_ref[...], 0.0)        # b1 already carries the level term
    # TODO(synk): nn.Dropout(0.1) is identity at inference; training-mode dropout not emulated.

    # Layer 2: (H2, H) @ (H, TB) -> (H2, TB).
    h2 = jnp.dot(w2_ref[...], h1.astype(w2_ref.dtype),
                 preferred_element_type=jnp.float32)
    h2 = jnp.maximum(h2 + b2_ref[...], 0.0)

    # Layer 3 (out_features == 1): VPU multiply + sublane reduce (skip an M=1 MXU matmul).
    z = jnp.sum(h2 * w3_ref[...], axis=0, keepdims=True) + b3_ref[0]   # (1, TB)

    # Out-of-range lanes of the final partial block are dropped by Pallas.
    o_ref[...] = jax.nn.sigmoid(z).astype(o_ref.dtype)


def recursive_density_forward(x, recursion_level, params, *, tile_b=None,
                              matmul_dtype=jnp.float32):
    """JAX wrapper mirroring RecursiveDensityFunction.forward (learned mode).

    `params` are in PyTorch nn.Linear layout:
      w1:(H, D+1) b1:(H,)  w2:(H2, H) b2:(H2,)  w3:(1, H2) b3:(1,)
    """
    w1, b1, w2, b2, w3, b3 = params
    B, D = x.shape
    H = w1.shape[0]
    H2 = w2.shape[0]
    assert w1.shape[1] == D + 1, "W1 must have input_dim + 1 columns"

    # Fold the recursion-level column into an effective layer-1 bias (exact):
    #   concat([x, level]) @ W1.T + b1 == x @ W1[:, :D].T + (level * W1[:, D] + b1)
    level = jnp.asarray(recursion_level, dtype=jnp.float32)
    b1_eff = (b1.astype(jnp.float32) + level * w1[:, D].astype(jnp.float32)).reshape(H, 1)

    w1x = w1[:, :D].astype(matmul_dtype)                 # (H, D)
    w2m = w2.astype(matmul_dtype)                        # (H2, H)
    b2c = b2.astype(jnp.float32).reshape(H2, 1)          # (H2, 1)
    w3c = w3.astype(jnp.float32).reshape(H2, 1)          # (H2, 1) column -> VPU path
    b3s = b3.astype(jnp.float32).reshape(1)              # SMEM scalar

    # ---- batch-tile sizing --------------------------------------------------
    # Per batch column (f32): double-buffered x rows + in-kernel transpose of
    # the x tile + h1 + h2 + double-buffered output row.  Budget ~12 MiB per
    # tile so it fits v5e's 16 MiB default scoped VMEM with headroom
    # (v6e/v7x have >= 32 MiB scoped).
    bytes_per_col = 4 * (3 * D + H + H2 + 2)
    vmem_budget = 12 * 1024 * 1024
    vmem_cap = max(128, (vmem_budget // bytes_per_col) // 128 * 128)

    if tile_b is None:
        # Aim for >= 2 grid steps whenever the batch allows it, so both v7x
        # TensorCores get work under dimension_semantics=("parallel",); the
        # extra ~0.35 us grid step is negligible on v5e/v6e at these sizes.
        target = _round_up(max(_cdiv(B, 2), 1), 128)
        tile_b = max(128, min(8192, vmem_cap, target))
    else:
        tile_b = max(128, min(vmem_cap, _round_up(tile_b, 128)))

    grid = (_cdiv(B, tile_b),)   # ragged tail handled as a Pallas partial block

    out_row = pl.pallas_call(
        _density_mlp_kernel,
        out_shape=jax.ShapeDtypeStruct((1, B), x.dtype),
        grid_spec=pltpu.PrefetchScalarGridSpec(
            num_scalar_prefetch=0,
            grid=grid,
            in_specs=[
                pl.BlockSpec((tile_b, D), lambda i: (i, 0)),   # x, native (B, D) layout
                pl.BlockSpec((H, D),      lambda i: (0, 0)),   # W1 (out, in), constant
                pl.BlockSpec((H, 1),      lambda i: (0, 0)),   # b1_eff column (level folded in)
                pl.BlockSpec((H2, H),     lambda i: (0, 0)),   # W2 (out, in), constant
                pl.BlockSpec((H2, 1),     lambda i: (0, 0)),   # b2 column
                pl.BlockSpec((H2, 1),     lambda i: (0, 0)),   # W3 column
                pl.BlockSpec(memory_space=pltpu.MemorySpace.SMEM),  # b3 scalar
            ],
            out_specs=pl.BlockSpec((1, tile_b), lambda i: (0, i)),  # lane-dense output
        ),
        compiler_params=pltpu.CompilerParams(
            dimension_semantics=("parallel",),
            vmem_limit_bytes=32 * 1024 * 1024),
    )(x, w1x, b1_eff, w2m, b2c, w3c, b3s)

    return out_row.reshape(B, 1)


def init_params(key, input_dim, hidden_dim):
    """Deterministic init matching the nn.Linear shapes in __init__ (PyTorch layout)."""
    d_in = input_dim + 1
    h = hidden_dim
    h2 = hidden_dim // 2
    keys = jax.random.split(key, 6)

    def linear(kw, kb, fan_in, fan_out):
        bound = 1.0 / math.sqrt(fan_in)
        w = jax.random.uniform(kw, (fan_out, fan_in), jnp.float32, -bound, bound)
        b = jax.random.uniform(kb, (fan_out,), jnp.float32, -bound, bound)
        return w, b

    w1, b1 = linear(keys[0], keys[1], d_in, h)
    w2, b2 = linear(keys[2], keys[3], h, h2)
    w3, b3 = linear(keys[4], keys[5], h2, 1)
    return (w1, b1, w2, b2, w3, b3)


def reference_forward(x, recursion_level, params):
    """Pure-JAX f32 reference matching the PyTorch forward exactly."""
    w1, b1, w2, b2, w3, b3 = params
    level_col = jnp.full((x.shape[0], 1), recursion_level, dtype=x.dtype)
    h = jnp.concatenate([x, level_col], axis=1)
    h = jnp.maximum(h @ w1.T + b1, 0.0)
    h = jnp.maximum(h @ w2.T + b2, 0.0)
    return jax.nn.sigmoid(h @ w3.T + b3)


if __name__ == "__main__":
    key = jax.random.PRNGKey(0)
    k_x, k_p, k_x2 = jax.random.split(key, 3)

    batch = 16
    input_dim = 32
    hidden_dim = 64
    recursion_level = 3

    x = jax.random.normal(k_x, (batch, input_dim), dtype=jnp.float32)
    params = init_params(k_p, input_dim, hidden_dim)
    ref = reference_forward(x, recursion_level, params)

    # Default path: f32 matmul operands -> must match the f32 reference tightly.
    out = recursive_density_forward(x, recursion_level, params)
    out = jax.block_until_ready(out)
    assert out.shape == (batch, 1)
    assert jnp.allclose(out, ref, atol=1e-4, rtol=1e-4), "f32 path mismatch vs reference"

    # Ragged multi-tile batch: exercises the no-pad partial last block and the
    # >= 2 grid-step ("parallel") tiling heuristic.
    batch2 = 1000
    x2 = jax.random.normal(k_x2, (batch2, input_dim), dtype=jnp.float32)
    ref2 = reference_forward(x2, recursion_level, params)
    out2 = jax.block_until_ready(
        recursive_density_forward(x2, recursion_level, params))
    assert out2.shape == (batch2, 1)
    assert jnp.allclose(out2, ref2, atol=1e-4, rtol=1e-4), "ragged-batch f32 mismatch"

    # Opt-in fast path: bf16 matmul operands (f32 accumulation / elementwise).
    out_bf16 = jax.block_until_ready(
        recursive_density_forward(x, recursion_level, params,
                                  matmul_dtype=jnp.bfloat16))
    assert out_bf16.shape == (batch, 1)
    assert jnp.allclose(out_bf16, ref, atol=3e-2, rtol=3e-2), "bf16 path mismatch vs reference"

    print("KERNEL_OK")
</pallas_src>

<mosaic_0001>
module attributes {stable_mosaic.version = 11 : i64} {
  func.func @_density_mlp_kernel(%arg0: i32, %arg1: memref<128x32xf32, #tpu.memory_space<vmem>>, %arg2: memref<64x32xf32, #tpu.memory_space<vmem>>, %arg3: memref<64x1xf32, #tpu.memory_space<vmem>>, %arg4: memref<32x64xf32, #tpu.memory_space<vmem>>, %arg5: memref<32x1xf32, #tpu.memory_space<vmem>>, %arg6: memref<32x1xf32, #tpu.memory_space<vmem>>, %arg7: memref<1xf32, #tpu.memory_space<smem>>, %arg8: memref<1x128xf32, #tpu.memory_space<vmem>>) attributes {dimension_semantics = [#tpu.dimension_semantics<parallel>], iteration_bounds = array<i64: 1>, scalar_prefetch = 0 : i64, scratch_operands = 0 : i64, tpu.core_type = #tpu.core_type<tc>, window_params = [{transform_indices = @transform_0, window_bounds = array<i64: 128, 32>}, {pipeline_mode = #tpu.pipeline_mode<synchronous>, transform_indices = @transform_1, window_bounds = array<i64: 64, 32>}, {pipeline_mode = #tpu.pipeline_mode<synchronous>, transform_indices = @transform_2, window_bounds = array<i64: 64, 1>}, {pipeline_mode = #tpu.pipeline_mode<synchronous>, transform_indices = @transform_3, window_bounds = array<i64: 32, 64>}, {pipeline_mode = #tpu.pipeline_mode<synchronous>, transform_indices = @transform_4, window_bounds = array<i64: 32, 1>}, {pipeline_mode = #tpu.pipeline_mode<synchronous>, transform_indices = @transform_5, window_bounds = array<i64: 32, 1>}, {transform_indices = @transform_6, window_bounds = array<i64: 1>}, {transform_indices = @transform_7, window_bounds = array<i64: 1, 128>}]} {
    %c0 = arith.constant 0 : index
    %c0_0 = arith.constant 0 : index
    %0 = vector.load %arg1[%c0, %c0_0] : memref<128x32xf32, #tpu.memory_space<vmem>>, vector<128x32xf32>
    %c0_1 = arith.constant 0 : index
    %c0_2 = arith.constant 0 : index
    %1 = vector.load %arg2[%c0_1, %c0_2] : memref<64x32xf32, #tpu.memory_space<vmem>>, vector<64x32xf32>
    %cst = arith.constant dense<0.000000e+00> : vector<64x128xf32>
    %2 = tpu.matmul %1, %0, %cst {dimension_numbers = #tpu.dot_dimension_numbers<[1], [1], [0], [0], [0, 0, 1, 0], [], []>} : vector<64x32xf32>, vector<128x32xf32>, vector<64x128xf32> -> vector<64x128xf32>
    %c0_3 = arith.constant 0 : index
    %c0_4 = arith.constant 0 : index
    %3 = vector.load %arg3[%c0_3, %c0_4] : memref<64x1xf32, #tpu.memory_space<vmem>>, vector<64x1xf32>
    %4 = vector.broadcast %3 : vector<64x1xf32> to vector<64x128xf32>
    %5 = arith.addf %2, %4 : vector<64x128xf32>
    %cst_5 = arith.constant 0.000000e+00 : f32
    %6 = vector.broadcast %cst_5 : f32 to vector<64x128xf32>
    %7 = arith.maximumf %5, %6 : vector<64x128xf32>
    %c0_6 = arith.constant 0 : index
    %c0_7 = arith.constant 0 : index
    %8 = vector.load %arg4[%c0_6, %c0_7] : memref<32x64xf32, #tpu.memory_space<vmem>>, vector<32x64xf32>
    %cst_8 = arith.constant dense<0.000000e+00> : vector<32x128xf32>
    %9 = tpu.matmul %8, %7, %cst_8 {dimension_numbers = #tpu.dot_dimension_numbers<[1], [0], [0], [1], [0, 0, 1, 1], [], []>} : vector<32x64xf32>, vector<64x128xf32>, vector<32x128xf32> -> vector<32x128xf32>
    %c0_9 = arith.constant 0 : index
    %c0_10 = arith.constant 0 : index
    %10 = vector.load %arg5[%c0_9, %c0_10] : memref<32x1xf32, #tpu.memory_space<vmem>>, vector<32x1xf32>
    %11 = vector.broadcast %10 : vector<32x1xf32> to vector<32x128xf32>
    %12 = arith.addf %9, %11 : vector<32x128xf32>
    %cst_11 = arith.constant 0.000000e+00 : f32
    %13 = vector.broadcast %cst_11 : f32 to vector<32x128xf32>
    %14 = arith.maximumf %12, %13 : vector<32x128xf32>
    %c0_12 = arith.constant 0 : index
    %c0_13 = arith.constant 0 : index
    %15 = vector.load %arg6[%c0_12, %c0_13] : memref<32x1xf32, #tpu.memory_space<vmem>>, vector<32x1xf32>
    %16 = vector.broadcast %15 : vector<32x1xf32> to vector<32x128xf32>
    %17 = arith.mulf %14, %16 : vector<32x128xf32>
    %cst_14 = arith.constant dense<0.000000e+00> : vector<128xf32>
    %18 = vector.multi_reduction <add>, %17, %cst_14 [0] : vector<32x128xf32> to vector<128xf32>
    %19 = vector.shape_cast %18 : vector<128xf32> to vector<1x128xf32>
    %c0_15 = arith.constant 0 : index
    %20 = memref.load %arg7[%c0_15] : memref<1xf32, #tpu.memory_space<smem>>
    %21 = vector.broadcast %20 : f32 to vector<1x128xf32>
    %22 = arith.addf %19, %21 : vector<1x128xf32>
    %23 = arith.negf %22 : vector<1x128xf32>
    %24 = math.exp %23 : vector<1x128xf32>
    %cst_16 = arith.constant 1.000000e+00 : f32
    %25 = vector.broadcast %cst_16 : f32 to vector<1x128xf32>
    %26 = arith.addf %25, %24 : vector<1x128xf32>
    %27 = arith.divf %25, %26 : vector<1x128xf32>
    %c0_17 = arith.constant 0 : index
    %c0_18 = arith.constant 0 : index
    %28 = vector.load %arg8[%c0_17, %c0_18] : memref<1x128xf32, #tpu.memory_space<vmem>>, vector<1x128xf32>
    tpu.vector_store %arg8[%c0_17, %c0_18], %27 {strides = array<i32>} : memref<1x128xf32, #tpu.memory_space<vmem>>, vector<1x128xf32>,
    return
  }
  func.func @transform_0(%arg0: i32) -> (i32, i32) {
    %c0_i32 = arith.constant 0 : i32
    %c0_i32_0 = arith.constant 0 : i32
    return %arg0, %c0_i32 : i32, i32
  }
  func.func @transform_1(%arg0: i32) -> (i32, i32) {
    %c0_i32 = arith.constant 0 : i32
    %c0_i32_0 = arith.constant 0 : i32
    %c0_i32_1 = arith.constant 0 : i32
    return %c0_i32, %c0_i32_0 : i32, i32
  }
  func.func @transform_2(%arg0: i32) -> (i32, i32) {
    %c0_i32 = arith.constant 0 : i32
    %c0_i32_0 = arith.constant 0 : i32
    %c0_i32_1 = arith.constant 0 : i32
    return %c0_i32, %c0_i32_0 : i32, i32
  }
  func.func @transform_3(%arg0: i32) -> (i32, i32) {
    %c0_i32 = arith.constant 0 : i32
    %c0_i32_0 = arith.constant 0 : i32
    %c0_i32_1 = arith.constant 0 : i32
    return %c0_i32, %c0_i32_0 : i32, i32
  }
  func.func @transform_4(%arg0: i32) -> (i32, i32) {
    %c0_i32 = arith.constant 0 : i32
    %c0_i32_0 = arith.constant 0 : i32
    %c0_i32_1 = arith.constant 0 : i32
    return %c0_i32, %c0_i32_0 : i32, i32
  }
  func.func @transform_5(%arg0: i32) -> (i32, i32) {
    %c0_i32 = arith.constant 0 : i32
    %c0_i32_0 = arith.constant 0 : i32
    %c0_i32_1 = arith.constant 0 : i32
    return %c0_i32, %c0_i32_0 : i32, i32
  }
  func.func @transform_6(%arg0: i32) -> i32 {
    %c0_i32 = arith.constant 0 : i32
    %c0_i32_0 = arith.constant 0 : i32
    return %c0_i32 : i32
  }
  func.func @transform_7(%arg0: i32) -> (i32, i32) {
    %c0_i32 = arith.constant 0 : i32
    %c0_i32_0 = arith.constant 0 : i32
    return %c0_i32, %arg0 : i32, i32
  }
}

</mosaic_0001>

<llo_original>
// kernel: tpu_custom_call.1
$region0: #{tpu_custom_call.1}
  #allocation0 [shape = 'u32[]', space=smem, size = 0x4, offset = 0x4, fixed_abs, tag = 'smem constant byte address 0x4 - core index']
  #allocation1 [shape = 'u32[144,128]{1,0:T(1,128)}', space=vmem, size = 0x12000, scoped, tag = 'internal scratch']
  #allocation2 [shape = 'f32[1]{0:T(128)S(6)}', space=smem, size = 0x200, scoped, tag = 'scoped memory for tpu_custom_call.1']
  %s0 = inlined_call_operand.vmem [shape: f32[16,32], index: 0, kind: input, shape index: {}]
  %s1 = inlined_call_operand.vmem [shape: f32[64,32], index: 1, kind: input, shape index: {}]
  %s2 = inlined_call_operand.vmem [shape: f32[64,1], index: 2, kind: input, shape index: {}]
  %s3 = inlined_call_operand.vmem [shape: f32[32,64], index: 3, kind: input, shape index: {}]
  %s4 = inlined_call_operand.vmem [shape: f32[32,1], index: 4, kind: input, shape index: {}]
  %s5 = inlined_call_operand.vmem [shape: f32[32,1], index: 5, kind: input, shape index: {}]
  %s6 = inlined_call_operand.<no memory space> [shape: f32[1], index: 6, kind: input, shape index: {}]
  %s7 = inlined_call_operand.hbm [shape: f32[1,16], index: 7, kind: output, shape index: {}]
  %s8 = sld [smem:[#allocation0]]
  $region38: #{tpu_custom_call.1} parent=0
    _
  %s10 = ssub.s32 1, %s8
  %s11 = scalar_select 0, %s10, %s8
  %12 = sst [smem:[#allocation2]] %s6
  $region1: #{tpu_custom_call.1} parent=0
    #allocation3 [shape = 'u8[512]{0}', space=vmem, size = 0x400, scoped, tag = 'output window, operand 0, single buffered']
    #allocation4 [shape = 's32[1]{0}', space=sflag, size = 0x4, scoped, tag = 'scoped memory for tpu_custom_call.1']
    %13 = vsyncpa [#allocation4], 0
    // Predicated region
    $region2: #{tpu_custom_call.1} parent=1 // pred_check
      _
    $region3: #{tpu_custom_call.1} parent=1 // pred_check_branch
      %15 = sbr.rel (0) target = $region5
    $region4: #{tpu_custom_call.1} parent=1 // pred_region
      _
    $region5: #{tpu_custom_call.1} parent=1 // pred_fallthru
      _
    // Predicated region
    $region6: #{tpu_custom_call.1} parent=1 // pred_check
      _
    $region7: #{tpu_custom_call.1} parent=1 // pred_check_branch
      %17 = sbr.rel (0) target = $region9
    $region8: #{tpu_custom_call.1} parent=1 // pred_region
      _
    $region9: #{tpu_custom_call.1} parent=1 // pred_fallthru
      _
    // Predicated region
    $region10: #{tpu_custom_call.1} parent=1 // pred_check
      _
    $region11: #{tpu_custom_call.1} parent=1 // pred_check_branch
      %19 = sbr.rel (0) target = $region13
    $region12: #{tpu_custom_call.1} parent=1 // pred_region
      _
    $region13: #{tpu_custom_call.1} parent=1 // pred_fallthru
      _
    // Predicated region
    $region14: #{tpu_custom_call.1} parent=1 // pred_check
      _
    $region15: #{tpu_custom_call.1} parent=1 // pred_check_branch
      %21 = sbr.rel (0) target = $region17
    $region16: #{tpu_custom_call.1} parent=1 // pred_region
      _
    $region17: #{tpu_custom_call.1} parent=1 // pred_fallthru
      _
    // Predicated region
    $region18: #{tpu_custom_call.1} parent=1 // pred_check
      _
    $region19: #{tpu_custom_call.1} parent=1 // pred_check_branch
      %23 = sbr.rel (0) target = $region21
    $region20: #{tpu_custom_call.1} parent=1 // pred_region
      _
    $region21: #{tpu_custom_call.1} parent=1 // pred_fallthru
      _
    // Predicated region
    $region22: #{tpu_custom_call.1} parent=1 // pred_check
      _
    $region23: #{tpu_custom_call.1} parent=1 // pred_check_branch
      %25 = sbr.rel (0) target = $region25
    $region24: #{tpu_custom_call.1} parent=1 // pred_region
      _
    $region25: #{tpu_custom_call.1} parent=1 // pred_fallthru
      _
    // Predicated region
    $region26: #{tpu_custom_call.1} parent=1 // pred_check
      _
    $region27: #{tpu_custom_call.1} parent=1 // pred_check_branch
      %27 = sbr.rel (0) target = $region29
    $region28: #{tpu_custom_call.1} parent=1 // pred_region
      _
    $region29: #{tpu_custom_call.1} parent=1 // pred_fallthru
      _
    %v28 = vld [vmem:[%s0] sm:$0xff]
    %v29 = vld [vmem:[%s0 + $0x8] sm:$0xff]
    %v30 = vld [vmem:[%s0 + $0x10] sm:$0xff]
    %v31 = vld [vmem:[%s0 + $0x18] sm:$0xff]
    %v32 = vld [vmem:[%s0 + $0x20] sm:$0xff]
    %v33 = vld [vmem:[%s0 + $0x28] sm:$0xff]
    %v34 = vld [vmem:[%s0 + $0x30] sm:$0xff]
    %v35 = vld [vmem:[%s0 + $0x38] sm:$0xff]
    %v36 = vld [vmem:[%s0 + $0x40] sm:$0xff]
    %v37 = vld [vmem:[%s0 + $0x48] sm:$0xff]
    %v38 = vld [vmem:[%s0 + $0x50] sm:$0xff]
    %v39 = vld [vmem:[%s0 + $0x58] sm:$0xff]
    %v40 = vld [vmem:[%s0 + $0x60] sm:$0xff]
    %v41 = vld [vmem:[%s0 + $0x68] sm:$0xff]
    %v42 = vld [vmem:[%s0 + $0x70] sm:$0xff]
    %v43 = vld [vmem:[%s0 + $0x78] sm:$0xff]
    %v44 = vld [vmem:[%s1] sm:$0xff]
    %v45 = vld [vmem:[%s1 + $0x8] sm:$0xff]
    %v46 = vld [vmem:[%s1 + $0x10] sm:$0xff]
    %v47 = vld [vmem:[%s1 + $0x18] sm:$0xff]
    %v48 = vld [vmem:[%s1 + $0x20] sm:$0xff]
    %v49 = vld [vmem:[%s1 + $0x28] sm:$0xff]
    %v50 = vld [vmem:[%s1 + $0x30] sm:$0xff]
    %v51 = vld [vmem:[%s1 + $0x38] sm:$0xff]
    %v52 = vld [vmem:[%s2] sm:$0xff]
    %v53 = vld [vmem:[%s2 + $0x8] sm:$0xff]
    %v54 = vld [vmem:[%s2 + $0x10] sm:$0xff]
    %v55 = vld [vmem:[%s2 + $0x18] sm:$0xff]
    %v56 = vld [vmem:[%s2 + $0x20] sm:$0xff]
    %v57 = vld [vmem:[%s2 + $0x28] sm:$0xff]
    %v58 = vld [vmem:[%s2 + $0x30] sm:$0xff]
    %v59 = vld [vmem:[%s2 + $0x38] sm:$0xff]
    %61 = vset.pattern.permute.xlu0 0
    %62 = vperm.xlu0 %61, %v52
    %v63 = vpop.permute.xlu0 %62
    %66 = vset.pattern.permute.xlu0 0
    %67 = vperm.xlu0 %66, %v53
    %v68 = vpop.permute.xlu0 %67
    %71 = vset.pattern.permute.xlu0 0
    %72 = vperm.xlu0 %71, %v54
    %v73 = vpop.permute.xlu0 %72
    %76 = vset.pattern.permute.xlu0 0
    %77 = vperm.xlu0 %76, %v55
    %v78 = vpop.permute.xlu0 %77
    %81 = vset.pattern.permute.xlu0 0
    %82 = vperm.xlu0 %81, %v56
    %v83 = vpop.permute.xlu0 %82
    %86 = vset.pattern.permute.xlu0 0
    %87 = vperm.xlu0 %86, %v57
    %v88 = vpop.permute.xlu0 %87
    %91 = vset.pattern.permute.xlu0 0
    %92 = vperm.xlu0 %91, %v58
    %v93 = vpop.permute.xlu0 %92
    %96 = vset.pattern.permute.xlu0 0
    %97 = vperm.xlu0 %96, %v59
    %v98 = vpop.permute.xlu0 %97
    %vm100 = vcmask 261120
    %v102 = vsel %vm100, %v44, 0
    %v105 = vsel %vm100, %v45, 0
    %v108 = vsel %vm100, %v46, 0
    %v111 = vsel %vm100, %v47, 0
    %v114 = vsel %vm100, %v48, 0
    %v117 = vsel %vm100, %v49, 0
    %v120 = vsel %vm100, %v50, 0
    %v123 = vsel %vm100, %v51, 0
    %v126 = vsel %vm100, %v28, 0
    %v129 = vsel %vm100, %v29, 0
    %v132 = vsel %vm100, %v30, 0
    %v135 = vsel %vm100, %v31, 0
    %v138 = vsel %vm100, %v32, 0
    %v141 = vsel %vm100, %v33, 0
    %v144 = vsel %vm100, %v34, 0
    %v147 = vsel %vm100, %v35, 0
    %v150 = vsel %vm100, %v36, 0
    %v153 = vsel %vm100, %v37, 0
    %v156 = vsel %vm100, %v38, 0
    %v159 = vsel %vm100, %v39, 0
    %v162 = vsel %vm100, %v40, 0
    %v165 = vsel %vm100, %v41, 0
    %v168 = vsel %vm100, %v42, 0
    %v171 = vsel %vm100, %v43, 0
    %173 = vmatprep.subr.mxu0 0.0
    %174 = vmatpush1.xpose.msra.mxu0 %v171
    %175 = vmatprep.subr.mxu0 0.0
    %176 = vmatpush1.xpose.msra.mxu0 %v168
    %177 = vmatprep.subr.mxu0 0.0
    %178 = vmatpush1.xpose.msra.mxu0 %v165
    %179 = vmatprep.subr.mxu0 0.0
    %180 = vmatpush1.xpose.msra.mxu0 %v162
    %181 = vmatprep.subr.mxu0 0.0
    %182 = vmatpush1.xpose.msra.mxu0 %v159
    %183 = vmatprep.subr.mxu0 0.0
    %184 = vmatpush1.xpose.msra.mxu0 %v156
    %185 = vmatprep.subr.mxu0 0.0
    %186 = vmatpush1.xpose.msra.mxu0 %v153
    %187 = vmatprep.subr.mxu0 0.0
    %188 = vmatpush1.xpose.msra.mxu0 %v150
    %189 = vmatprep.subr.mxu0 0.0
    %190 = vmatpush1.xpose.msra.mxu0 %v147
    %191 = vmatprep.subr.mxu0 0.0
    %192 = vmatpush1.xpose.msra.mxu0 %v144
    %193 = vmatprep.subr.mxu0 0.0
    %194 = vmatpush1.xpose.msra.mxu0 %v141
    %195 = vmatprep.subr.mxu0 0.0
    %196 = vmatpush1.xpose.msra.mxu0 %v138
    %197 = vmatprep.subr.mxu0 0.0
    %198 = vmatpush1.xpose.msra.mxu0 %v135
    %199 = vmatprep.subr.mxu0 0.0
    %200 = vmatpush1.xpose.msra.mxu0 %v132
    %201 = vmatprep.subr.mxu0 0.0
    %202 = vmatpush1.xpose.msra.mxu0 %v129
    %203 = vmatprep.subr.mxu0 0.0
    %204 = vmatpush1.xpose.msra.mxu0 %v126
    %205 = vmatprep.subr.mxu0 0.0
    %206 = vmatpush2.xpose.msra.mxu0 0.0
    %207 = vmatprep.subr.mxu0 0.0
    %208 = vmatpush2.xpose.msra.mxu0 0.0
    %209 = vmatprep.subr.mxu0 0.0
    %210 = vmatpush2.xpose.msra.mxu0 0.0
    %211 = vmatprep.subr.mxu0 0.0
    %212 = vmatpush2.xpose.msra.mxu0 0.0
    %213 = vmatprep.subr.mxu0 0.0
    %214 = vmatpush2.xpose.msra.mxu0 0.0
    %215 = vmatprep.subr.mxu0 0.0
    %216 = vmatpush2.xpose.msra.mxu0 0.0
    %217 = vmatprep.subr.mxu0 0.0
    %218 = vmatpush2.xpose.msra.mxu0 0.0
    %219 = vmatprep.subr.mxu0 0.0
    %220 = vmatpush2.xpose.msra.mxu0 0.0
    %221 = vmatprep.subr.mxu0 0.0
    %222 = vmatpush2.xpose.msra.mxu0 0.0
    %223 = vmatprep.subr.mxu0 0.0
    %224 = vmatpush2.xpose.msra.mxu0 0.0
    %225 = vmatprep.subr.mxu0 0.0
    %226 = vmatpush2.xpose.msra.mxu0 0.0
    %227 = vmatprep.subr.mxu0 0.0
    %228 = vmatpush2.xpose.msra.mxu0 0.0
    %229 = vmatprep.subr.mxu0 0.0
    %230 = vmatpush2.xpose.msra.mxu0 0.0
    %231 = vmatprep.subr.mxu0 0.0
    %232 = vmatpush2.xpose.msra.mxu0 0.0
    %233 = vmatprep.subr.mxu0 0.0
    %234 = vmatpush2.xpose.msra.mxu0 0.0
    %235 = vmatprep.subr.mxu0 0.0
    %236 = vmatpush2.xpose.msra.mxu0 0.0
    %237 = vmatprep.mubr.f32.mxu0 0.0
    %238 = vmatmul.mubr.f32.gmra.mxu0 %v102
    %v239 = vpop.f32.mrf.mxu0
    %v240 = vadd.f32 %v63, %v239
    %v241 = vpop.f32.mrf.mxu0
    %242 = vmatprep.mubr.f32.mxu0 0.0
    %243 = vmatmul.mubr.f32.gmra.mxu0 %v105
    %v244 = vpop.f32.mrf.mxu0
    %v245 = vadd.f32 %v68, %v244
    %v246 = vpop.f32.mrf.mxu0
    %247 = vmatprep.mubr.f32.mxu0 0.0
    %248 = vmatmul.mubr.f32.gmra.mxu0 %v108
    %v249 = vpop.f32.mrf.mxu0
    %v250 = vadd.f32 %v73, %v249
    %v251 = vpop.f32.mrf.mxu0
    %252 = vmatprep.mubr.f32.mxu0 0.0
    %253 = vmatmul.mubr.f32.gmra.mxu0 %v111
    %v254 = vpop.f32.mrf.mxu0
    %v255 = vadd.f32 %v78, %v254
    %v256 = vpop.f32.mrf.mxu0
    %257 = vmatprep.mubr.f32.mxu0 0.0
    %258 = vmatmul.mubr.f32.gmra.mxu0 %v114
    %v259 = vpop.f32.mrf.mxu0
    %v260 = vadd.f32 %v83, %v259
    %v261 = vpop.f32.mrf.mxu0
    %262 = vmatprep.mubr.f32.mxu0 0.0
    %263 = vmatmul.mubr.f32.gmra.mxu0 %v117
    %v264 = vpop.f32.mrf.mxu0
    %v265 = vadd.f32 %v88, %v264
    %v266 = vpop.f32.mrf.mxu0
    %267 = vmatprep.mubr.f32.mxu0 0.0
    %268 = vmatmul.mubr.f32.gmra.mxu0 %v120
    %v269 = vpop.f32.mrf.mxu0
    %v270 = vadd.f32 %v93, %v269
    %v271 = vpop.f32.mrf.mxu0
    %272 = vmatprep.mubr.f32.mxu0 0.0
    %273 = vmatmul.mubr.f32.gmra.mxu0 %v123
    %v274 = vpop.f32.mrf.mxu0
    %v275 = vadd.f32 %v98, %v274
    %v276 = vpop.f32.mrf.mxu0
    %277 = vdwg.mxu0
    %v278 = vmax.f32 %v240, 0.0
    %v279 = vmax.f32 %v245, 0.0
    %v280 = vmax.f32 %v250, 0.0
    %v281 = vmax.f32 %v255, 0.0
    %v282 = vmax.f32 %v260, 0.0
    %v283 = vmax.f32 %v265, 0.0
    %v284 = vmax.f32 %v270, 0.0
    %v285 = vmax.f32 %v275, 0.0
    %v286 = vld [vmem:[%s3] sm:$0xff]
    %v287 = vld [vmem:[%s3 + $0x8] sm:$0xff]
    %v288 = vld [vmem:[%s3 + $0x10] sm:$0xff]
    %v289 = vld [vmem:[%s3 + $0x18] sm:$0xff]
    %v290 = vld [vmem:[%s4] sm:$0xff]
    %v291 = vld [vmem:[%s4 + $0x8] sm:$0xff]
    %v292 = vld [vmem:[%s4 + $0x10] sm:$0xff]
    %v293 = vld [vmem:[%s4 + $0x18] sm:$0xff]
    %295 = vset.pattern.permute.xlu0 0
    %296 = vperm.xlu0 %295, %v290
    %v297 = vpop.permute.xlu0 %296
    %300 = vset.pattern.permute.xlu0 0
    %301 = vperm.xlu0 %300, %v291
    %v302 = vpop.permute.xlu0 %301
    %305 = vset.pattern.permute.xlu0 0
    %306 = vperm.xlu0 %305, %v292
    %v307 = vpop.permute.xlu0 %306
    %310 = vset.pattern.permute.xlu0 0
    %311 = vperm.xlu0 %310, %v293
    %v312 = vpop.permute.xlu0 %311
    %vm314 = vcmask 523264
    %v316 = vsel %vm314, %v286, 0
    %v319 = vsel %vm314, %v287, 0
    %v322 = vsel %vm314, %v288, 0
    %v325 = vsel %vm314, %v289, 0
    %327 = vmatprep.subr.mxu0 0.0
    %328 = vmatpush1.msra.mxu0 0.0
    %329 = vmatprep.subr.mxu0 0.0
    %330 = vmatpush1.msra.mxu0 0.0
    %331 = vmatprep.subr.mxu0 0.0
    %332 = vmatpush1.msra.mxu0 0.0
    %333 = vmatprep.subr.mxu0 0.0
    %334 = vmatpush1.msra.mxu0 0.0
    %335 = vmatprep.subr.mxu0 0.0
    %336 = vmatpush1.msra.mxu0 0.0
    %337 = vmatprep.subr.mxu0 0.0
    %338 = vmatpush1.msra.mxu0 0.0
    %339 = vmatprep.subr.mxu0 0.0
    %340 = vmatpush1.msra.mxu0 0.0
    %341 = vmatprep.subr.mxu0 0.0
    %342 = vmatpush1.msra.mxu0 0.0
    %343 = vmatprep.subr.mxu0 0.0
    %344 = vmatpush1.msra.mxu0 %v285
    %345 = vmatprep.subr.mxu0 0.0
    %346 = vmatpush1.msra.mxu0 %v284
    %347 = vmatprep.subr.mxu0 0.0
    %348 = vmatpush1.msra.mxu0 %v283
    %349 = vmatprep.subr.mxu0 0.0
    %350 = vmatpush1.msra.mxu0 %v282
    %351 = vmatprep.subr.mxu0 0.0
    %352 = vmatpush1.msra.mxu0 %v281
    %353 = vmatprep.subr.mxu0 0.0
    %354 = vmatpush1.msra.mxu0 %v280
    %355 = vmatprep.subr.mxu0 0.0
    %356 = vmatpush1.msra.mxu0 %v279
    %357 = vmatprep.subr.mxu0 0.0
    %358 = vmatpush1.msra.mxu0 %v278
    %359 = vmatprep.subr.mxu0 0.0
    %360 = vmatpush2.msra.mxu0 0.0
    %361 = vmatprep.subr.mxu0 0.0
    %362 = vmatpush2.msra.mxu0 0.0
    %363 = vmatprep.subr.mxu0 0.0
    %364 = vmatpush2.msra.mxu0 0.0
    %365 = vmatprep.subr.mxu0 0.0
    %366 = vmatpush2.msra.mxu0 0.0
    %367 = vmatprep.subr.mxu0 0.0
    %368 = vmatpush2.msra.mxu0 0.0
    %369 = vmatprep.subr.mxu0 0.0
    %370 = vmatpush2.msra.mxu0 0.0
    %371 = vmatprep.subr.mxu0 0.0
    %372 = vmatpush2.msra.mxu0 0.0
    %373 = vmatprep.subr.mxu0 0.0
    %374 = vmatpush2.msra.mxu0 0.0
    %375 = vmatprep.subr.mxu0 0.0
    %376 = vmatpush2.msra.mxu0 0.0
    %377 = vmatprep.subr.mxu0 0.0
    %378 = vmatpush2.msra.mxu0 0.0
    %379 = vmatprep.subr.mxu0 0.0
    %380 = vmatpush2.msra.mxu0 0.0
    %381 = vmatprep.subr.mxu0 0.0
    %382 = vmatpush2.msra.mxu0 0.0
    %383 = vmatprep.subr.mxu0 0.0
    %384 = vmatpush2.msra.mxu0 0.0
    %385 = vmatprep.subr.mxu0 0.0
    %386 = vmatpush2.msra.mxu0 0.0
    %387 = vmatprep.subr.mxu0 0.0
    %388 = vmatpush2.msra.mxu0 0.0
    %389 = vmatprep.subr.mxu0 0.0
    %390 = vmatpush2.msra.mxu0 0.0
    %391 = vmatprep.mubr.f32.mxu0 0.0
    %392 = vmatmul.mubr.f32.gmra.mxu0 %v316
    %v393 = vpop.f32.mrf.mxu0
    %v394 = vadd.f32 %v297, %v393
    %v395 = vpop.f32.mrf.mxu0
    %396 = vmatprep.mubr.f32.mxu0 0.0
    %397 = vmatmul.mubr.f32.gmra.mxu0 %v319
    %v398 = vpop.f32.mrf.mxu0
    %v399 = vadd.f32 %v302, %v398
    %v400 = vpop.f32.mrf.mxu0
    %401 = vmatprep.mubr.f32.mxu0 0.0
    %402 = vmatmul.mubr.f32.gmra.mxu0 %v322
    %v403 = vpop.f32.mrf.mxu0
    %v404 = vadd.f32 %v307, %v403
    %v405 = vpop.f32.mrf.mxu0
    %406 = vmatprep.mubr.f32.mxu0 0.0
    %407 = vmatmul.mubr.f32.gmra.mxu0 %v325
    %v408 = vpop.f32.mrf.mxu0
    %v409 = vadd.f32 %v312, %v408
    %v410 = vpop.f32.mrf.mxu0
    %411 = vdwg.mxu0
    %v412 = vmax.f32 %v394, 0.0
    %v413 = vmax.f32 %v399, 0.0
    %v414 = vmax.f32 %v404, 0.0
    %v415 = vmax.f32 %v409, 0.0
    %v416 = vld [vmem:[%s5] sm:$0xff]
    %v417 = vld [vmem:[%s5 + $0x8] sm:$0xff]
    %v418 = vld [vmem:[%s5 + $0x10] sm:$0xff]
    %v419 = vld [vmem:[%s5 + $0x18] sm:$0xff]
    %421 = vset.pattern.permute.xlu0 0
    %422 = vperm.xlu0 %421, %v416
    %v423 = vpop.permute.xlu0 %422
    %426 = vset.pattern.permute.xlu0 0
    %427 = vperm.xlu0 %426, %v417
    %v428 = vpop.permute.xlu0 %427
    %431 = vset.pattern.permute.xlu0 0
    %432 = vperm.xlu0 %431, %v418
    %v433 = vpop.permute.xlu0 %432
    %436 = vset.pattern.permute.xlu0 0
    %437 = vperm.xlu0 %436, %v419
    %v438 = vpop.permute.xlu0 %437
    %v440 = vmul.f32 %v412, %v423
    %v441 = vmul.f32 %v413, %v428
    %v442 = vmul.f32 %v414, %v433
    %v443 = vmul.f32 %v415, %v438
    %v444 = vadd.f32 %v440, %v441
    %v445 = vadd.f32 %v444, %v442
    %v446 = vadd.f32 %v445, %v443
    %v447 = vrot.slane %v446, 4
    %v448 = vadd.f32 %v446, %v447
    %v449 = vrot.slane %v448, 2
    %v450 = vadd.f32 %v448, %v449
    %v451 = vrot.slane %v450, 1
    %v452 = vadd.f32 %v450, %v451
    %s453 = sld [smem:[#allocation2]]
    %v454 = vstv %s453
    %v455 = vadd.f32 %v452, %v454
    %v456 = vxor.u32 %v455, 2147483648
    %v457 = vmul.f32 %v456, 1.442695
    %v458 = vpow.pop %v457
    %v459 = vadd.f32 %v458, 1.0
    %v460 = vrcp.pop %v459
    %v461 = vmul.f32 1.0, %v460
    %462 = vst [vmem:[#allocation3] sm:$0x1] %v461
    // Predicated region
    $region30: #{tpu_custom_call.1} parent=1 // pred_check
      _
    $region31: #{tpu_custom_call.1} parent=1 // pred_check_branch
      %464 = sbr.rel (0) target = $region33
    $region32: #{tpu_custom_call.1} parent=1 // pred_region
      %s466 = ssub.s32 16, 16
      %467 = vsyncadd [#allocation4], %s466
      %s469 = sshll.u32 [#allocation3], 4
      %s470 = int_to_ptr.vmem [resolvable:$true] %s469
      %472 = dma.vmem_to_hbm [thread:$0]  %s470, 16, %s7, [#allocation4]
    $region33: #{tpu_custom_call.1} parent=1 // pred_fallthru
      _
    // Predicated region
    $region34: #{tpu_custom_call.1} parent=1 // pred_check
      _
    $region35: #{tpu_custom_call.1} parent=1 // pred_check_branch
      %474 = sbr.rel (0) target = $region37
    $region36: #{tpu_custom_call.1} parent=1 // pred_region
      %475 = dma.done [#allocation4], 16
    $region37: #{tpu_custom_call.1} parent=1 // pred_fallthru
      _
    %476 = vsyncpa [#allocation4], 1

</llo_original>
